<compile_context>
chip_gen: v7x
topology: tpu7x:2x2x1
jax: 0.10.0
libtpu: 0.0.40
codegen_flags: <defaults>
</compile_context>

<pallas_src>
import jax
import jax.numpy as jnp
from jax.experimental import pallas as pl
from jax.experimental.pallas import tpu as pltpu


def rnn_kernel(x_ref, wih_t_ref, whh_t_ref, bias_ref, wfc_t_ref, bfc_ref,
               out_ref, h_ref):
    # x_ref:     (Tc*Bp, I) VMEM  -- time chunk, rows grouped per timestep
    # wih_t_ref: (I, H)     VMEM  (= W_ih^T)
    # whh_t_ref: (H, H)     VMEM  (= W_hh^T)
    # bias_ref:  (1, H)     VMEM  (= b_ih + b_hh)
    # wfc_t_ref: (H, O)     VMEM  (= W_fc^T)
    # bfc_ref:   (1, O)     VMEM
    # out_ref:   (Bp, O)    VMEM  -- written only on the last grid step
    # h_ref:     (Bp, H)    VMEM scratch -- hidden state carried across chunks
    chunk = pl.program_id(0)
    Bp, H = h_ref.shape
    Tc = x_ref.shape[0] // Bp

    @pl.when(chunk == 0)
    def _():
        h_ref[...] = jnp.zeros_like(h_ref)

    # Hoisted input projection for the whole chunk: one well-shaped MXU matmul
    # with the bias folded in, off the serial critical path.
    pre_all = (jnp.dot(x_ref[...], wih_t_ref[...],
                       preferred_element_type=jnp.float32)
               + bias_ref[...])                      # (Tc*Bp, H)

    whh_t = whh_t_ref[...]
    h = h_ref[...]
    # Fully unrolled serial recurrence: one matmul + one tanh per timestep.
    for t in range(Tc):
        pre_t = pre_all[t * Bp:(t + 1) * Bp, :]      # static (sublane-aligned) slice
        h = jnp.tanh(pre_t + jnp.dot(h, whh_t,
                                     preferred_element_type=jnp.float32))
    h_ref[...] = h

    @pl.when(chunk == pl.num_programs(0) - 1)
    def _():
        out_ref[...] = (jnp.dot(h, wfc_t_ref[...],
                                preferred_element_type=jnp.float32)
                        + bfc_ref[...])


def rnn_forward(x, w_ih, w_hh, b_ih, b_hh, w_fc, b_fc, *, time_chunk=4):
    """x: (B, T, I) float32.  Returns (B, output_size) float32."""
    B, T, I = x.shape
    H = w_hh.shape[0]
    O = w_fc.shape[0]

    # Pad batch to a sublane multiple (>= 8). Pad rows evolve independently
    # (row-wise recurrence) and are dropped at the end.
    Bp = max(8, ((B + 7) // 8) * 8)

    # Pick a time-chunk size that divides T (no zero-padding of time: a padded
    # zero timestep would change the recurrence).
    Tc = min(time_chunk, T)
    while T % Tc != 0:
        Tc -= 1
    n_chunks = T // Tc

    x_tm = jnp.transpose(x, (1, 0, 2)).astype(jnp.float32)      # (T, B, I)
    if Bp != B:
        x_tm = jnp.pad(x_tm, ((0, 0), (0, Bp - B), (0, 0)))     # (T, Bp, I)
    x_flat = x_tm.reshape(T * Bp, I)                            # rows grouped per timestep

    bias = (b_ih + b_hh).reshape(1, H).astype(jnp.float32)

    grid_spec = pltpu.PrefetchScalarGridSpec(
        num_scalar_prefetch=0,
        grid=(n_chunks,),
        in_specs=[
            pl.BlockSpec((Tc * Bp, I), lambda t: (t, 0)),   # streamed x chunk
            pl.BlockSpec((I, H), lambda t: (0, 0)),         # resident weights
            pl.BlockSpec((H, H), lambda t: (0, 0)),
            pl.BlockSpec((1, H), lambda t: (0, 0)),
            pl.BlockSpec((H, O), lambda t: (0, 0)),
            pl.BlockSpec((1, O), lambda t: (0, 0)),
        ],
        out_specs=pl.BlockSpec((Bp, O), lambda t: (0, 0)),
        scratch_shapes=[pltpu.VMEM((Bp, H), jnp.float32)],
    )

    out_p = pl.pallas_call(
        rnn_kernel,
        out_shape=jax.ShapeDtypeStruct((Bp, O), jnp.float32),
        grid_spec=grid_spec,
        compiler_params=pltpu.CompilerParams(
            dimension_semantics=("arbitrary",),      # serial recurrence axis
            vmem_limit_bytes=32 * 1024 * 1024,       # safe on v7x's 64 MiB VMEM
        ),
    )(x_flat,
      w_ih.T.astype(jnp.float32),
      w_hh.T.astype(jnp.float32),
      bias,
      w_fc.T.astype(jnp.float32),
      b_fc.reshape(1, O).astype(jnp.float32))

    return out_p[:B]


def rnn_reference(x, w_ih, w_hh, b_ih, b_hh, w_fc, b_fc):
    B, T, I = x.shape
    H = w_hh.shape[0]
    h = jnp.zeros((B, H), jnp.float32)
    for t in range(T):
        h = jnp.tanh(x[:, t, :] @ w_ih.T + b_ih + h @ w_hh.T + b_hh)
    return h @ w_fc.T + b_fc


if __name__ == "__main__":
    # Module hyperparameters (consistent with the PyTorch script).
    input_size = 4
    hidden_size = 16
    output_size = 2
    batch = 2
    seq = 8

    key = jax.random.PRNGKey(0)
    kx, k1, k2, k3, k4, k5, k6 = jax.random.split(key, 7)

    # Deterministic init, PyTorch default scale U(-1/sqrt(H), 1/sqrt(H)).
    s = 1.0 / jnp.sqrt(hidden_size)
    w_ih = jax.random.uniform(k1, (hidden_size, input_size), jnp.float32, -s, s)
    w_hh = jax.random.uniform(k2, (hidden_size, hidden_size), jnp.float32, -s, s)
    b_ih = jax.random.uniform(k3, (hidden_size,), jnp.float32, -s, s)
    b_hh = jax.random.uniform(k4, (hidden_size,), jnp.float32, -s, s)
    w_fc = jax.random.uniform(k5, (output_size, hidden_size), jnp.float32, -s, s)
    b_fc = jax.random.uniform(k6, (output_size,), jnp.float32, -s, s)

    x = jax.random.normal(kx, (batch, seq, input_size), jnp.float32)

    out = rnn_forward(x, w_ih, w_hh, b_ih, b_hh, w_fc, b_fc)
    out = jax.block_until_ready(out)

    ref = rnn_reference(x, w_ih, w_hh, b_ih, b_hh, w_fc, b_fc)
    assert out.shape == (batch, output_size)
    assert jnp.allclose(out, ref, atol=1e-5, rtol=1e-5)

    print("KERNEL_OK")
</pallas_src>

<mosaic_0001>
module attributes {stable_mosaic.version = 11 : i64} {
  func.func @rnn_kernel(%arg0: i32, %arg1: memref<32x4xf32, #tpu.memory_space<vmem>>, %arg2: memref<4x16xf32, #tpu.memory_space<vmem>>, %arg3: memref<16x16xf32, #tpu.memory_space<vmem>>, %arg4: memref<1x16xf32, #tpu.memory_space<vmem>>, %arg5: memref<16x2xf32, #tpu.memory_space<vmem>>, %arg6: memref<1x2xf32, #tpu.memory_space<vmem>>, %arg7: memref<8x2xf32, #tpu.memory_space<vmem>>, %arg8: memref<8x16xf32, #tpu.memory_space<vmem>>) attributes {dimension_semantics = [#tpu.dimension_semantics<arbitrary>], iteration_bounds = array<i64: 2>, scalar_prefetch = 0 : i64, scratch_operands = 1 : i64, tpu.core_type = #tpu.core_type<tc>, window_params = [{transform_indices = @transform_0, window_bounds = array<i64: 32, 4>}, {pipeline_mode = #tpu.pipeline_mode<synchronous>, transform_indices = @transform_1, window_bounds = array<i64: 4, 16>}, {pipeline_mode = #tpu.pipeline_mode<synchronous>, transform_indices = @transform_2, window_bounds = array<i64: 16, 16>}, {pipeline_mode = #tpu.pipeline_mode<synchronous>, transform_indices = @transform_3, window_bounds = array<i64: 1, 16>}, {pipeline_mode = #tpu.pipeline_mode<synchronous>, transform_indices = @transform_4, window_bounds = array<i64: 16, 2>}, {pipeline_mode = #tpu.pipeline_mode<synchronous>, transform_indices = @transform_5, window_bounds = array<i64: 1, 2>}, {pipeline_mode = #tpu.pipeline_mode<synchronous>, transform_indices = @transform_6, window_bounds = array<i64: 8, 2>}]} {
    %c0_i32 = arith.constant 0 : i32
    %0 = arith.cmpi eq, %arg0, %c0_i32 : i32
    %1 = arith.extui %0 : i1 to i32
    %c0_i32_0 = arith.constant 0 : i32
    %2 = arith.cmpi ne, %1, %c0_i32_0 : i32
    scf.if %2 {
      %cst_17 = arith.constant 0.000000e+00 : f32
      %31 = vector.broadcast %cst_17 : f32 to vector<8x16xf32>
      %c0_18 = arith.constant 0 : index
      %c0_19 = arith.constant 0 : index
      %32 = vector.load %arg8[%c0_18, %c0_19] : memref<8x16xf32, #tpu.memory_space<vmem>>, vector<8x16xf32>
      tpu.vector_store %arg8[%c0_18, %c0_19], %31 {strides = array<i32>} : memref<8x16xf32, #tpu.memory_space<vmem>>, vector<8x16xf32>,
    } else {
    }
    %c0 = arith.constant 0 : index
    %c0_1 = arith.constant 0 : index
    %3 = vector.load %arg1[%c0, %c0_1] : memref<32x4xf32, #tpu.memory_space<vmem>>, vector<32x4xf32>
    %c0_2 = arith.constant 0 : index
    %c0_3 = arith.constant 0 : index
    %4 = vector.load %arg2[%c0_2, %c0_3] : memref<4x16xf32, #tpu.memory_space<vmem>>, vector<4x16xf32>
    %cst = arith.constant dense<0.000000e+00> : vector<32x16xf32>
    %5 = tpu.matmul %3, %4, %cst {dimension_numbers = #tpu.dot_dimension_numbers<[1], [0], [0], [1], [0, 0, 1, 1], [], []>} : vector<32x4xf32>, vector<4x16xf32>, vector<32x16xf32> -> vector<32x16xf32>
    %c0_4 = arith.constant 0 : index
    %c0_5 = arith.constant 0 : index
    %6 = vector.load %arg4[%c0_4, %c0_5] : memref<1x16xf32, #tpu.memory_space<vmem>>, vector<1x16xf32>
    %7 = vector.broadcast %6 : vector<1x16xf32> to vector<32x16xf32>
    %8 = arith.addf %5, %7 : vector<32x16xf32>
    %c0_6 = arith.constant 0 : index
    %c0_7 = arith.constant 0 : index
    %9 = vector.load %arg3[%c0_6, %c0_7] : memref<16x16xf32, #tpu.memory_space<vmem>>, vector<16x16xf32>
    %c0_8 = arith.constant 0 : index
    %c0_9 = arith.constant 0 : index
    %10 = vector.load %arg8[%c0_8, %c0_9] : memref<8x16xf32, #tpu.memory_space<vmem>>, vector<8x16xf32>
    %11 = vector.extract_strided_slice %8 {offsets = [0, 0], sizes = [8, 16], strides = [1, 1]} : vector<32x16xf32> to vector<8x16xf32>
    %cst_10 = arith.constant dense<0.000000e+00> : vector<8x16xf32>
    %12 = tpu.matmul %10, %9, %cst_10 {dimension_numbers = #tpu.dot_dimension_numbers<[1], [0], [0], [1], [0, 0, 1, 1], [], []>} : vector<8x16xf32>, vector<16x16xf32>, vector<8x16xf32> -> vector<8x16xf32>
    %13 = arith.addf %11, %12 : vector<8x16xf32>
    %14 = math.tanh %13 : vector<8x16xf32>
    %15 = vector.extract_strided_slice %8 {offsets = [8, 0], sizes = [8, 16], strides = [1, 1]} : vector<32x16xf32> to vector<8x16xf32>
    %cst_11 = arith.constant dense<0.000000e+00> : vector<8x16xf32>
    %16 = tpu.matmul %14, %9, %cst_11 {dimension_numbers = #tpu.dot_dimension_numbers<[1], [0], [0], [1], [0, 0, 1, 1], [], []>} : vector<8x16xf32>, vector<16x16xf32>, vector<8x16xf32> -> vector<8x16xf32>
    %17 = arith.addf %15, %16 : vector<8x16xf32>
    %18 = math.tanh %17 : vector<8x16xf32>
    %19 = vector.extract_strided_slice %8 {offsets = [16, 0], sizes = [8, 16], strides = [1, 1]} : vector<32x16xf32> to vector<8x16xf32>
    %cst_12 = arith.constant dense<0.000000e+00> : vector<8x16xf32>
    %20 = tpu.matmul %18, %9, %cst_12 {dimension_numbers = #tpu.dot_dimension_numbers<[1], [0], [0], [1], [0, 0, 1, 1], [], []>} : vector<8x16xf32>, vector<16x16xf32>, vector<8x16xf32> -> vector<8x16xf32>
    %21 = arith.addf %19, %20 : vector<8x16xf32>
    %22 = math.tanh %21 : vector<8x16xf32>
    %23 = vector.extract_strided_slice %8 {offsets = [24, 0], sizes = [8, 16], strides = [1, 1]} : vector<32x16xf32> to vector<8x16xf32>
    %cst_13 = arith.constant dense<0.000000e+00> : vector<8x16xf32>
    %24 = tpu.matmul %22, %9, %cst_13 {dimension_numbers = #tpu.dot_dimension_numbers<[1], [0], [0], [1], [0, 0, 1, 1], [], []>} : vector<8x16xf32>, vector<16x16xf32>, vector<8x16xf32> -> vector<8x16xf32>
    %25 = arith.addf %23, %24 : vector<8x16xf32>
    %26 = math.tanh %25 : vector<8x16xf32>
    %c0_14 = arith.constant 0 : index
    %c0_15 = arith.constant 0 : index
    %27 = vector.load %arg8[%c0_14, %c0_15] : memref<8x16xf32, #tpu.memory_space<vmem>>, vector<8x16xf32>
    tpu.vector_store %arg8[%c0_14, %c0_15], %26 {strides = array<i32>} : memref<8x16xf32, #tpu.memory_space<vmem>>, vector<8x16xf32>,
    %c1_i32 = arith.constant 1 : i32
    %28 = arith.cmpi eq, %arg0, %c1_i32 : i32
    %29 = arith.extui %28 : i1 to i32
    %c0_i32_16 = arith.constant 0 : i32
    %30 = arith.cmpi ne, %29, %c0_i32_16 : i32
    scf.if %30 {
      %c0_17 = arith.constant 0 : index
      %c0_18 = arith.constant 0 : index
      %31 = vector.load %arg5[%c0_17, %c0_18] : memref<16x2xf32, #tpu.memory_space<vmem>>, vector<16x2xf32>
      %cst_19 = arith.constant dense<0.000000e+00> : vector<8x2xf32>
      %32 = tpu.matmul %26, %31, %cst_19 {dimension_numbers = #tpu.dot_dimension_numbers<[1], [0], [0], [1], [0, 0, 1, 1], [], []>} : vector<8x16xf32>, vector<16x2xf32>, vector<8x2xf32> -> vector<8x2xf32>
      %c0_20 = arith.constant 0 : index
      %c0_21 = arith.constant 0 : index
      %33 = vector.load %arg6[%c0_20, %c0_21] : memref<1x2xf32, #tpu.memory_space<vmem>>, vector<1x2xf32>
      %34 = vector.broadcast %33 : vector<1x2xf32> to vector<8x2xf32>
      %35 = arith.addf %32, %34 : vector<8x2xf32>
      %c0_22 = arith.constant 0 : index
      %c0_23 = arith.constant 0 : index
      %36 = vector.load %arg7[%c0_22, %c0_23] : memref<8x2xf32, #tpu.memory_space<vmem>>, vector<8x2xf32>
      tpu.vector_store %arg7[%c0_22, %c0_23], %35 {strides = array<i32>} : memref<8x2xf32, #tpu.memory_space<vmem>>, vector<8x2xf32>,
    } else {
    }
    return
  }
  func.func @transform_0(%arg0: i32) -> (i32, i32) {
    %c0_i32 = arith.constant 0 : i32
    %c0_i32_0 = arith.constant 0 : i32
    return %arg0, %c0_i32 : i32, i32
  }
  func.func @transform_1(%arg0: i32) -> (i32, i32) {
    %c0_i32 = arith.constant 0 : i32
    %c0_i32_0 = arith.constant 0 : i32
    %c0_i32_1 = arith.constant 0 : i32
    return %c0_i32, %c0_i32_0 : i32, i32
  }
  func.func @transform_2(%arg0: i32) -> (i32, i32) {
    %c0_i32 = arith.constant 0 : i32
    %c0_i32_0 = arith.constant 0 : i32
    %c0_i32_1 = arith.constant 0 : i32
    return %c0_i32, %c0_i32_0 : i32, i32
  }
  func.func @transform_3(%arg0: i32) -> (i32, i32) {
    %c0_i32 = arith.constant 0 : i32
    %c0_i32_0 = arith.constant 0 : i32
    %c0_i32_1 = arith.constant 0 : i32
    return %c0_i32, %c0_i32_0 : i32, i32
  }
  func.func @transform_4(%arg0: i32) -> (i32, i32) {
    %c0_i32 = arith.constant 0 : i32
    %c0_i32_0 = arith.constant 0 : i32
    %c0_i32_1 = arith.constant 0 : i32
    return %c0_i32, %c0_i32_0 : i32, i32
  }
  func.func @transform_5(%arg0: i32) -> (i32, i32) {
    %c0_i32 = arith.constant 0 : i32
    %c0_i32_0 = arith.constant 0 : i32
    %c0_i32_1 = arith.constant 0 : i32
    return %c0_i32, %c0_i32_0 : i32, i32
  }
  func.func @transform_6(%arg0: i32) -> (i32, i32) {
    %c0_i32 = arith.constant 0 : i32
    %c0_i32_0 = arith.constant 0 : i32
    %c0_i32_1 = arith.constant 0 : i32
    return %c0_i32, %c0_i32_0 : i32, i32
  }
}

</mosaic_0001>

<llo_original>
// kernel: tpu_custom_call.1
$region0: #{tpu_custom_call.1}
  #allocation0 [shape = 'u32[]', space=smem, size = 0x4, offset = 0x4, fixed_abs, tag = 'smem constant byte address 0x4 - core index']
  #allocation1 [shape = 'u32[144,128]{1,0:T(1,128)}', space=vmem, size = 0x12000, scoped, tag = 'internal scratch']
  #allocation2 [shape = 'f32[8,16]{1,0:T(8,128)}', space=vmem, size = 0x1000, scoped, tag = 'scratch operand']
  %s0 = inlined_call_operand.vmem [shape: f32[64,4], index: 0, kind: input, shape index: {}]
  %s1 = inlined_call_operand.vmem [shape: f32[4,16], index: 1, kind: input, shape index: {}]
  %s2 = inlined_call_operand.vmem [shape: f32[16,16], index: 2, kind: input, shape index: {}]
  %s3 = inlined_call_operand.vmem [shape: f32[1,16], index: 3, kind: input, shape index: {}]
  %s4 = inlined_call_operand.vmem [shape: f32[16,2], index: 4, kind: input, shape index: {}]
  %s5 = inlined_call_operand.vmem [shape: f32[1,2], index: 5, kind: input, shape index: {}]
  %s6 = inlined_call_operand.vmem [shape: f32[8,2], index: 6, kind: output, shape index: {}]
  %s7 = sld [smem:[#allocation0]]
  $region65: #{tpu_custom_call.1} parent=0
    _
  %s9 = ssub.s32 1, %s7
  %s10 = scalar_select 0, %s9, %s7
  loop: start=0, step=1, limit=4
  $region2: #{tpu_custom_call.1} parent=0 // loop_pre_header
    _
  $region3: #{tpu_custom_call.1} parent=0 // loop_header
    %s12 = sphi 0, %s16
    %p13 = scmp.ge.s32.totalorder %s12, 4
    %s22 = sphi 0, %s24
    %s25 = sphi 0, %s22
    %s26 = sphi 0, %s25
    %s42 = sphi 0, %s26
    %s46 = sphi 0, %s46
    %s48 = sphi 0, %s46
    %s49 = sphi 0, %s48
    %s63 = sphi 0, %s49
    %s67 = sphi 0, %s67
    %s69 = sphi 0, %s67
    %s70 = sphi 0, %s69
    %s84 = sphi 0, %s70
    %s88 = sphi 0, %s88
    %s90 = sphi 0, %s88
    %s91 = sphi 0, %s90
    %s105 = sphi 0, %s91
    %s109 = sphi 0, %s109
    %s111 = sphi 0, %s109
    %s112 = sphi 0, %s111
    %s126 = sphi 0, %s112
    %s130 = sphi 0, %s130
    %s132 = sphi 0, %s130
    %s133 = sphi 0, %s132
    %s147 = sphi 0, %s133
    %s151 = sphi 0, %s151
    %s153 = sphi 0, %s151
    %s154 = sphi 0, %s153
    %s168 = sphi 0, %s154
  $region4: #{tpu_custom_call.1} parent=0 // loop_header_branch
    %15 = sbr.rel (%p13) target = $region8
  $region5: #{tpu_custom_call.1} parent=0 // loop_body
    %s17 = ssub.s32 %s12, 1
    %s18 = ssub.s32 %s12, 2
    %s19 = sadd.s32 %s12, 1
    %s20 = ssub.s32 %s12, %s19
    %p21 = scmp.eq.s32.totalorder %s20, 0
    %s23 = sadd.s32 %s22, 1
    %s24 = scalar_select %p21, %s22, %s23
    %p27 = pneg %p21
    %p28 = scmp.eq.s32.totalorder %s12, 1
    %p29 = por %p27, %p28
    %p30 = scmp.ne.s32.totalorder %s22, %s25
    %p31 = scmp.eq.s32.totalorder %s12, 0
    %p32 = por %p30, %p31
    %p33 = scmp.ne.s32.totalorder %s22, %s25
    %p34 = scmp.eq.s32.totalorder %s17, 1
    %p35 = por %p33, %p34
    %p36 = scmp.ne.s32.totalorder %s25, %s26
    %p37 = scmp.eq.s32.totalorder %s17, 0
    %p38 = por %p36, %p37
    %p39 = scmp.ne.s32.totalorder %s25, %s26
    %p40 = scmp.eq.s32.totalorder %s18, 1
    %p41 = por %p39, %p40
    %p43 = scmp.ne.s32.totalorder %s26, %s42
    %p44 = scmp.eq.s32.totalorder %s18, 0
    %p45 = por %p43, %p44
    %s47 = sadd.s32 %s46, 1
    %p50 = scmp.eq.s32.totalorder %s12, 1
    %p51 = scmp.ne.s32.totalorder %s46, %s48
    %p52 = scmp.eq.s32.totalorder %s12, 0
    %p53 = por %p51, %p52
    %p54 = scmp.ne.s32.totalorder %s46, %s48
    %p55 = scmp.eq.s32.totalorder %s17, 1
    %p56 = por %p54, %p55
    %p57 = scmp.ne.s32.totalorder %s48, %s49
    %p58 = scmp.eq.s32.totalorder %s17, 0
    %p59 = por %p57, %p58
    %p60 = scmp.ne.s32.totalorder %s48, %s49
    %p61 = scmp.eq.s32.totalorder %s18, 1
    %p62 = por %p60, %p61
    %p64 = scmp.ne.s32.totalorder %s49, %s63
    %p65 = scmp.eq.s32.totalorder %s18, 0
    %p66 = por %p64, %p65
    %s68 = sadd.s32 %s67, 1
    %p71 = scmp.eq.s32.totalorder %s12, 1
    %p72 = scmp.ne.s32.totalorder %s67, %s69
    %p73 = scmp.eq.s32.totalorder %s12, 0
    %p74 = por %p72, %p73
    %p75 = scmp.ne.s32.totalorder %s67, %s69
    %p76 = scmp.eq.s32.totalorder %s17, 1
    %p77 = por %p75, %p76
    %p78 = scmp.ne.s32.totalorder %s69, %s70
    %p79 = scmp.eq.s32.totalorder %s17, 0
    %p80 = por %p78, %p79
    %p81 = scmp.ne.s32.totalorder %s69, %s70
    %p82 = scmp.eq.s32.totalorder %s18, 1
    %p83 = por %p81, %p82
    %p85 = scmp.ne.s32.totalorder %s70, %s84
    %p86 = scmp.eq.s32.totalorder %s18, 0
    %p87 = por %p85, %p86
    %s89 = sadd.s32 %s88, 1
    %p92 = scmp.eq.s32.totalorder %s12, 1
    %p93 = scmp.ne.s32.totalorder %s88, %s90
    %p94 = scmp.eq.s32.totalorder %s12, 0
    %p95 = por %p93, %p94
    %p96 = scmp.ne.s32.totalorder %s88, %s90
    %p97 = scmp.eq.s32.totalorder %s17, 1
    %p98 = por %p96, %p97
    %p99 = scmp.ne.s32.totalorder %s90, %s91
    %p100 = scmp.eq.s32.totalorder %s17, 0
    %p101 = por %p99, %p100
    %p102 = scmp.ne.s32.totalorder %s90, %s91
    %p103 = scmp.eq.s32.totalorder %s18, 1
    %p104 = por %p102, %p103
    %p106 = scmp.ne.s32.totalorder %s91, %s105
    %p107 = scmp.eq.s32.totalorder %s18, 0
    %p108 = por %p106, %p107
    %s110 = sadd.s32 %s109, 1
    %p113 = scmp.eq.s32.totalorder %s12, 1
    %p114 = scmp.ne.s32.totalorder %s109, %s111
    %p115 = scmp.eq.s32.totalorder %s12, 0
    %p116 = por %p114, %p115
    %p117 = scmp.ne.s32.totalorder %s109, %s111
    %p118 = scmp.eq.s32.totalorder %s17, 1
    %p119 = por %p117, %p118
    %p120 = scmp.ne.s32.totalorder %s111, %s112
    %p121 = scmp.eq.s32.totalorder %s17, 0
    %p122 = por %p120, %p121
    %p123 = scmp.ne.s32.totalorder %s111, %s112
    %p124 = scmp.eq.s32.totalorder %s18, 1
    %p125 = por %p123, %p124
    %p127 = scmp.ne.s32.totalorder %s112, %s126
    %p128 = scmp.eq.s32.totalorder %s18, 0
    %p129 = por %p127, %p128
    %s131 = sadd.s32 %s130, 1
    %p134 = scmp.eq.s32.totalorder %s12, 1
    %p135 = scmp.ne.s32.totalorder %s130, %s132
    %p136 = scmp.eq.s32.totalorder %s12, 0
    %p137 = por %p135, %p136
    %p138 = scmp.ne.s32.totalorder %s130, %s132
    %p139 = scmp.eq.s32.totalorder %s17, 1
    %p140 = por %p138, %p139
    %p141 = scmp.ne.s32.totalorder %s132, %s133
    %p142 = scmp.eq.s32.totalorder %s17, 0
    %p143 = por %p141, %p142
    %p144 = scmp.ne.s32.totalorder %s132, %s133
    %p145 = scmp.eq.s32.totalorder %s18, 1
    %p146 = por %p144, %p145
    %p148 = scmp.ne.s32.totalorder %s133, %s147
    %p149 = scmp.eq.s32.totalorder %s18, 0
    %p150 = por %p148, %p149
    %s152 = sadd.s32 %s151, 1
    %p155 = scmp.eq.s32.totalorder %s12, 1
    %p156 = scmp.ne.s32.totalorder %s151, %s153
    %p157 = scmp.eq.s32.totalorder %s12, 0
    %p158 = por %p156, %p157
    %p159 = scmp.ne.s32.totalorder %s151, %s153
    %p160 = scmp.eq.s32.totalorder %s17, 1
    %p161 = por %p159, %p160
    %p162 = scmp.ne.s32.totalorder %s153, %s154
    %p163 = scmp.eq.s32.totalorder %s17, 0
    %p164 = por %p162, %p163
    %p165 = scmp.ne.s32.totalorder %s153, %s154
    %p166 = scmp.eq.s32.totalorder %s18, 1
    %p167 = por %p165, %p166
    %p169 = scmp.ne.s32.totalorder %s154, %s168
    %p170 = scmp.eq.s32.totalorder %s18, 0
    %p171 = por %p169, %p170
    %p172 = scmp.le.s32.totalorder 1, %s12
    %p173 = scmp.lt.s32.totalorder %s12, 3
    %p174 = pnand %p172, %p173
    %p175 = pneg %p174
    // Predicated region
    $region9: #{tpu_custom_call.1} parent=5 // pred_check
      _
    $region10: #{tpu_custom_call.1} parent=5 // pred_check_branch
      %177 = sbr.rel (%p174) target = $region12
    $region11: #{tpu_custom_call.1} parent=5 // pred_region
      %s178 = ssub.s32 %s12, 1
      // Predicated region
      $region13: #{tpu_custom_call.1} parent=11 // pred_check
        %p179 = pneg %p59
      $region14: #{tpu_custom_call.1} parent=11 // pred_check_branch
        %181 = sbr.rel (%p179) target = $region16
      $region15: #{tpu_custom_call.1} parent=11 // pred_region
        _
      $region16: #{tpu_custom_call.1} parent=11 // pred_fallthru
        _
      // Predicated region
      $region17: #{tpu_custom_call.1} parent=11 // pred_check
        %p182 = pneg %p80
      $region18: #{tpu_custom_call.1} parent=11 // pred_check_branch
        %184 = sbr.rel (%p182) target = $region20
      $region19: #{tpu_custom_call.1} parent=11 // pred_region
        _
      $region20: #{tpu_custom_call.1} parent=11 // pred_fallthru
        _
      // Predicated region
      $region21: #{tpu_custom_call.1} parent=11 // pred_check
        %p185 = pneg %p101
      $region22: #{tpu_custom_call.1} parent=11 // pred_check_branch
        %187 = sbr.rel (%p185) target = $region24
      $region23: #{tpu_custom_call.1} parent=11 // pred_region
        _
      $region24: #{tpu_custom_call.1} parent=11 // pred_fallthru
        _
      // Predicated region
      $region25: #{tpu_custom_call.1} parent=11 // pred_check
        %p188 = pneg %p122
      $region26: #{tpu_custom_call.1} parent=11 // pred_check_branch
        %190 = sbr.rel (%p188) target = $region28
      $region27: #{tpu_custom_call.1} parent=11 // pred_region
        _
      $region28: #{tpu_custom_call.1} parent=11 // pred_fallthru
        _
      // Predicated region
      $region29: #{tpu_custom_call.1} parent=11 // pred_check
        %p191 = pneg %p143
      $region30: #{tpu_custom_call.1} parent=11 // pred_check_branch
        %193 = sbr.rel (%p191) target = $region32
      $region31: #{tpu_custom_call.1} parent=11 // pred_region
        _
      $region32: #{tpu_custom_call.1} parent=11 // pred_fallthru
        _
    $region12: #{tpu_custom_call.1} parent=5 // pred_fallthru
      _
    %p194 = scmp.lt.s32.totalorder %s12, 2
    // Predicated region
    $region33: #{tpu_custom_call.1} parent=5 // pred_check
      %p195 = pneg %p194
    $region34: #{tpu_custom_call.1} parent=5 // pred_check_branch
      %197 = sbr.rel (%p195) target = $region36
    $region35: #{tpu_custom_call.1} parent=5 // pred_region
      // Predicated region
      $region37: #{tpu_custom_call.1} parent=35 // pred_check
        %p198 = pneg %p32
      $region38: #{tpu_custom_call.1} parent=35 // pred_check_branch
        %200 = sbr.rel (%p198) target = $region40
      $region39: #{tpu_custom_call.1} parent=35 // pred_region
        %s201 = smul.u32 4, %s12
        %p202 = scmp.lt.s32.totalorder %s201, 7
        %s203 = scalar_select %p202, %s201, 7
        %s204 = smul.addr %s203, 8
        %s205 = scalar_lea.vmem %s0, %s204
        %s206 = smul.u32 4, %s12
      $region40: #{tpu_custom_call.1} parent=35 // pred_fallthru
        _
    $region36: #{tpu_custom_call.1} parent=5 // pred_fallthru
      _
    %p207 = scmp.le.s32.totalorder 1, %s12
    %p208 = scmp.lt.s32.totalorder %s12, 3
    %p209 = pnand %p207, %p208
    %p210 = pneg %p209
    // Predicated region
    $region41: #{tpu_custom_call.1} parent=5 // pred_check
      _
    $region42: #{tpu_custom_call.1} parent=5 // pred_check_branch
      %212 = sbr.rel (%p209) target = $region44
    $region43: #{tpu_custom_call.1} parent=5 // pred_region
      %s213 = ssub.s32 %s12, 1
      %s214 = smul.u32 4, %s17
      %p215 = scmp.lt.s32.totalorder %s214, 7
      %s216 = scalar_select %p215, %s214, 7
      %s217 = smul.addr %s216, 8
      %s218 = scalar_lea.vmem %s0, %s217
      %p219 = pneg %p38
      %p220 = pneg %p35
      %p221 = pneg %p59
      %p222 = pneg %p56
      %p223 = pneg %p80
      %p224 = pneg %p77
      %p225 = pneg %p101
      %p226 = pneg %p98
      %p227 = pneg %p122
      %p228 = pneg %p119
      %p229 = pneg %p143
      %p230 = pneg %p140
      %p231 = pneg %p164
      %p232 = pneg %p161
      %s233 = smul.u32 4, %s17
      %p234 = scmp.lt.s32.totalorder %s233, 7
      %s235 = scalar_select %p234, %s233, 7
      %s236 = smul.addr %s235, 8
      %s237 = scalar_lea.vmem %s0, %s236
      %s238 = smul.u32 4, %s17
      %p239 = scmp.eq.s32.totalorder %s17, 0
      // Predicated region
      $region45: #{tpu_custom_call.1} parent=43 // pred_check
        %p240 = pneg %p239
      $region46: #{tpu_custom_call.1} parent=43 // pred_check_branch
        %242 = sbr.rel (%p240) target = $region48
      $region47: #{tpu_custom_call.1} parent=43 // pred_region
        %vm243 = vcmask 130048
        %244 = vst.msk [vmem:[#allocation2] sm:$0xff] %vm243, 0.0
      $region48: #{tpu_custom_call.1} parent=43 // pred_fallthru
        _
      %v245 = vld [vmem:[%s237] sm:$0xff]
      %v246 = vld [vmem:[%s237 + $0x8] sm:$0xff]
      %v247 = vld [vmem:[%s237 + $0x10] sm:$0xff]
      %v248 = vld [vmem:[%s237 + $0x18] sm:$0xff]
      %v249 = vld [vmem:[%s1] sm:$0xf]
      %v250 = vld [vmem:[%s3] sm:$0x1]
      %v252 = vlaneseq
      %v253 = vshrl.u32 %v252, 7
      %v254 = vsub.s32 0, %v253
      %v255 = vrot.slane %v250, %v254
      %vm257 = vcmask 31744
      %v259 = vsel %vm257, %v245, 0
      %v262 = vsel %vm257, %v246, 0
      %v265 = vsel %vm257, %v247, 0
      %v268 = vsel %vm257, %v248, 0
      %vm270 = vcmask 1043456
      %v272 = vsel %vm270, %v249, 0
      %274 = vmatprep.subr.mxu0 0.0
      %275 = vmatpush1.msra.mxu0 %v272
      %276 = vmatprep.subr.mxu0 0.0
      %277 = vmatpush1.msra.mxu0 0.0
      %278 = vmatprep.subr.mxu0 0.0
      %279 = vmatpush1.msra.mxu0 0.0
      %280 = vmatprep.subr.mxu0 0.0
      %281 = vmatpush1.msra.mxu0 0.0
      %282 = vmatprep.subr.mxu0 0.0
      %283 = vmatpush1.msra.mxu0 0.0
      %284 = vmatprep.subr.mxu0 0.0
      %285 = vmatpush1.msra.mxu0 0.0
      %286 = vmatprep.subr.mxu0 0.0
      %287 = vmatpush1.msra.mxu0 0.0
      %288 = vmatprep.subr.mxu0 0.0
      %289 = vmatpush1.msra.mxu0 0.0
      %290 = vmatprep.subr.mxu0 0.0
      %291 = vmatpush1.msra.mxu0 0.0
      %292 = vmatprep.subr.mxu0 0.0
      %293 = vmatpush1.msra.mxu0 0.0
      %294 = vmatprep.subr.mxu0 0.0
      %295 = vmatpush1.msra.mxu0 0.0
      %296 = vmatprep.subr.mxu0 0.0
      %297 = vmatpush1.msra.mxu0 0.0
      %298 = vmatprep.subr.mxu0 0.0
      %299 = vmatpush1.msra.mxu0 0.0
      %300 = vmatprep.subr.mxu0 0.0
      %301 = vmatpush1.msra.mxu0 0.0
      %302 = vmatprep.subr.mxu0 0.0
      %303 = vmatpush1.msra.mxu0 0.0
      %304 = vmatprep.subr.mxu0 0.0
      %305 = vmatpush1.msra.mxu0 0.0
      %306 = vmatprep.subr.mxu0 0.0
      %307 = vmatpush1.msra.mxu0 0.0
      %308 = vmatprep.subr.mxu0 0.0
      %309 = vmatpush1.msra.mxu0 0.0
      %310 = vmatprep.subr.mxu0 0.0
      %311 = vmatpush1.msra.mxu0 0.0
      %312 = vmatprep.subr.mxu0 0.0
      %313 = vmatpush1.msra.mxu0 0.0
      %314 = vmatprep.subr.mxu0 0.0
      %315 = vmatpush1.msra.mxu0 0.0
      %316 = vmatprep.subr.mxu0 0.0
      %317 = vmatpush1.msra.mxu0 0.0
      %318 = vmatprep.subr.mxu0 0.0
      %319 = vmatpush1.msra.mxu0 0.0
      %320 = vmatprep.subr.mxu0 0.0
      %321 = vmatpush1.msra.mxu0 0.0
      %322 = vmatprep.subr.mxu0 0.0
      %323 = vmatpush1.msra.mxu0 0.0
      %324 = vmatprep.subr.mxu0 0.0
      %325 = vmatpush1.msra.mxu0 0.0
      %326 = vmatprep.subr.mxu0 0.0
      %327 = vmatpush1.msra.mxu0 0.0
      %328 = vmatprep.subr.mxu0 0.0
      %329 = vmatpush1.msra.mxu0 0.0
      %330 = vmatprep.subr.mxu0 0.0
      %331 = vmatpush1.msra.mxu0 0.0
      %332 = vmatprep.subr.mxu0 0.0
      %333 = vmatpush1.msra.mxu0 0.0
      %334 = vmatprep.subr.mxu0 0.0
      %335 = vmatpush1.msra.mxu0 0.0
      %336 = vmatprep.subr.mxu0 0.0
      %337 = vmatpush1.msra.mxu0 0.0
      %338 = vmatprep.mubr.f32.mxu0 0.0
      %339 = vmatmul.mubr.f32.gmra.mrb[0].mxu0 %v259
      %v340 = vpop.f32.mrb[0].mxu0
      %v341 = vadd.f32 %v255, %v340
      %v342 = vpop.f32.mrb[0].mxu0
      %343 = vmatprep.mubr.f32.mxu0 0.0
      %344 = vmatmul.mubr.f32.gmra.mrb[0].mxu0 %v262
      %v345 = vpop.f32.mrb[0].mxu0
      %v346 = vadd.f32 %v255, %v345
      %v347 = vpop.f32.mrb[0].mxu0
      %348 = vmatprep.mubr.f32.mxu0 0.0
      %349 = vmatmul.mubr.f32.gmra.mrb[0].mxu0 %v265
      %v350 = vpop.f32.mrb[0].mxu0
      %v351 = vadd.f32 %v255, %v350
      %v352 = vpop.f32.mrb[0].mxu0
      %353 = vmatprep.mubr.f32.mxu0 0.0
      %354 = vmatmul.mubr.f32.gmra.mrb[0].mxu0 %v268
      %v355 = vpop.f32.mrb[0].mxu0
      %v356 = vadd.f32 %v255, %v355
      %v357 = vpop.f32.mrb[0].mxu0
      %358 = vdwg.mxu0
      %v359 = vld [vmem:[%s2] sm:$0xff]
      %v360 = vld [vmem:[%s2 + $0x8] sm:$0xff]
      %v361 = vld [vmem:[#allocation2] sm:$0xff]
      %vm362 = vcmask 130048
      %v364 = vsel %vm362, %v361, 0
      %366 = vmatprep.subr.mxu0 0.0
      %367 = vmatpush1.msra.mxu0 %v359
      %368 = vmatprep.subr.mxu0 0.0
      %369 = vmatpush1.msra.mxu0 %v360
      %370 = vmatprep.subr.mxu0 0.0
      %371 = vmatpush1.msra.mxu0 0.0
      %372 = vmatprep.subr.mxu0 0.0
      %373 = vmatpush1.msra.mxu0 0.0
      %374 = vmatprep.subr.mxu0 0.0
      %375 = vmatpush1.msra.mxu0 0.0
      %376 = vmatprep.subr.mxu0 0.0
      %377 = vmatpush1.msra.mxu0 0.0
      %378 = vmatprep.subr.mxu0 0.0
      %379 = vmatpush1.msra.mxu0 0.0
      %380 = vmatprep.subr.mxu0 0.0
      %381 = vmatpush1.msra.mxu0 0.0
      %382 = vmatprep.subr.mxu0 0.0
      %383 = vmatpush1.msra.mxu0 0.0
      %384 = vmatprep.subr.mxu0 0.0
      %385 = vmatpush1.msra.mxu0 0.0
      %386 = vmatprep.subr.mxu0 0.0
      %387 = vmatpush1.msra.mxu0 0.0
      %388 = vmatprep.subr.mxu0 0.0
      %389 = vmatpush1.msra.mxu0 0.0
      %390 = vmatprep.subr.mxu0 0.0
      %391 = vmatpush1.msra.mxu0 0.0
      %392 = vmatprep.subr.mxu0 0.0
      %393 = vmatpush1.msra.mxu0 0.0
      %394 = vmatprep.subr.mxu0 0.0
      %395 = vmatpush1.msra.mxu0 0.0
      %396 = vmatprep.subr.mxu0 0.0
      %397 = vmatpush1.msra.mxu0 0.0
      %398 = vmatprep.subr.mxu0 0.0
      %399 = vmatpush1.msra.mxu0 0.0
      %400 = vmatprep.subr.mxu0 0.0
      %401 = vmatpush1.msra.mxu0 0.0
      %402 = vmatprep.subr.mxu0 0.0
      %403 = vmatpush1.msra.mxu0 0.0
      %404 = vmatprep.subr.mxu0 0.0
      %405 = vmatpush1.msra.mxu0 0.0
      %406 = vmatprep.subr.mxu0 0.0
      %407 = vmatpush1.msra.mxu0 0.0
      %408 = vmatprep.subr.mxu0 0.0
      %409 = vmatpush1.msra.mxu0 0.0
      %410 = vmatprep.subr.mxu0 0.0
      %411 = vmatpush1.msra.mxu0 0.0
      %412 = vmatprep.subr.mxu0 0.0
      %413 = vmatpush1.msra.mxu0 0.0
      %414 = vmatprep.subr.mxu0 0.0
      %415 = vmatpush1.msra.mxu0 0.0
      %416 = vmatprep.subr.mxu0 0.0
      %417 = vmatpush1.msra.mxu0 0.0
      %418 = vmatprep.subr.mxu0 0.0
      %419 = vmatpush1.msra.mxu0 0.0
      %420 = vmatprep.subr.mxu0 0.0
      %421 = vmatpush1.msra.mxu0 0.0
      %422 = vmatprep.subr.mxu0 0.0
      %423 = vmatpush1.msra.mxu0 0.0
      %424 = vmatprep.subr.mxu0 0.0
      %425 = vmatpush1.msra.mxu0 0.0
      %426 = vmatprep.subr.mxu0 0.0
      %427 = vmatpush1.msra.mxu0 0.0
      %428 = vmatprep.subr.mxu0 0.0
      %429 = vmatpush1.msra.mxu0 0.0
      %430 = vmatprep.mubr.f32.mxu0 0.0
      %431 = vmatmul.mubr.f32.gmra.mrb[0].mxu0 %v364
      %v432 = vpop.f32.mrb[0].mxu0
      %v433 = vadd.f32 0.0, %v432
      %v434 = vpop.f32.mrb[0].mxu0
      %435 = vdwg.mxu0
      %v436 = vadd.f32 %v341, %v433
      %v437 = vtanh.pop %v436
      %v439 = vsel %vm362, %v437, 0
      %441 = vmatprep.subr.mxu0 0.0
      %442 = vmatpush1.msra.mxu0 %v359
      %443 = vmatprep.subr.mxu0 0.0
      %444 = vmatpush1.msra.mxu0 %v360
      %445 = vmatprep.subr.mxu0 0.0
      %446 = vmatpush1.msra.mxu0 0.0
      %447 = vmatprep.subr.mxu0 0.0
      %448 = vmatpush1.msra.mxu0 0.0
      %449 = vmatprep.subr.mxu0 0.0
      %450 = vmatpush1.msra.mxu0 0.0
      %451 = vmatprep.subr.mxu0 0.0
      %452 = vmatpush1.msra.mxu0 0.0
      %453 = vmatprep.subr.mxu0 0.0
      %454 = vmatpush1.msra.mxu0 0.0
      %455 = vmatprep.subr.mxu0 0.0
      %456 = vmatpush1.msra.mxu0 0.0
      %457 = vmatprep.subr.mxu0 0.0
      %458 = vmatpush1.msra.mxu0 0.0
      %459 = vmatprep.subr.mxu0 0.0
      %460 = vmatpush1.msra.mxu0 0.0
      %461 = vmatprep.subr.mxu0 0.0
      %462 = vmatpush1.msra.mxu0 0.0
      %463 = vmatprep.subr.mxu0 0.0
      %464 = vmatpush1.msra.mxu0 0.0
      %465 = vmatprep.subr.mxu0 0.0
      %466 = vmatpush1.msra.mxu0 0.0
      %467 = vmatprep.subr.mxu0 0.0
      %468 = vmatpush1.msra.mxu0 0.0
      %469 = vmatprep.subr.mxu0 0.0
      %470 = vmatpush1.msra.mxu0 0.0
      %471 = vmatprep.subr.mxu0 0.0
      %472 = vmatpush1.msra.mxu0 0.0
      %473 = vmatprep.subr.mxu0 0.0
      %474 = vmatpush1.msra.mxu0 0.0
      %475 = vmatprep.subr.mxu0 0.0
      %476 = vmatpush1.msra.mxu0 0.0
      %477 = vmatprep.subr.mxu0 0.0
      %478 = vmatpush1.msra.mxu0 0.0
      %479 = vmatprep.subr.mxu0 0.0
      %480 = vmatpush1.msra.mxu0 0.0
      %481 = vmatprep.subr.mxu0 0.0
      %482 = vmatpush1.msra.mxu0 0.0
      %483 = vmatprep.subr.mxu0 0.0
      %484 = vmatpush1.msra.mxu0 0.0
      %485 = vmatprep.subr.mxu0 0.0
      %486 = vmatpush1.msra.mxu0 0.0
      %487 = vmatprep.subr.mxu0 0.0
      %488 = vmatpush1.msra.mxu0 0.0
      %489 = vmatprep.subr.mxu0 0.0
      %490 = vmatpush1.msra.mxu0 0.0
      %491 = vmatprep.subr.mxu0 0.0
      %492 = vmatpush1.msra.mxu0 0.0
      %493 = vmatprep.subr.mxu0 0.0
      %494 = vmatpush1.msra.mxu0 0.0
      %495 = vmatprep.subr.mxu0 0.0
      %496 = vmatpush1.msra.mxu0 0.0
      %497 = vmatprep.subr.mxu0 0.0
      %498 = vmatpush1.msra.mxu0 0.0
      %499 = vmatprep.subr.mxu0 0.0
      %500 = vmatpush1.msra.mxu0 0.0
      %501 = vmatprep.subr.mxu0 0.0
      %502 = vmatpush1.msra.mxu0 0.0
      %503 = vmatprep.subr.mxu0 0.0
      %504 = vmatpush1.msra.mxu0 0.0
      %505 = vmatprep.mubr.f32.mxu0 0.0
      %506 = vmatmul.mubr.f32.gmra.mrb[0].mxu0 %v439
      %v507 = vpop.f32.mrb[0].mxu0
      %v508 = vadd.f32 0.0, %v507
      %v509 = vpop.f32.mrb[0].mxu0
      %510 = vdwg.mxu0
      %v511 = vadd.f32 %v346, %v508
      %v512 = vtanh.pop %v511
      %v514 = vsel %vm362, %v512, 0
      %516 = vmatprep.subr.mxu0 0.0
      %517 = vmatpush1.msra.mxu0 %v359
      %518 = vmatprep.subr.mxu0 0.0
      %519 = vmatpush1.msra.mxu0 %v360
      %520 = vmatprep.subr.mxu0 0.0
      %521 = vmatpush1.msra.mxu0 0.0
      %522 = vmatprep.subr.mxu0 0.0
      %523 = vmatpush1.msra.mxu0 0.0
      %524 = vmatprep.subr.mxu0 0.0
      %525 = vmatpush1.msra.mxu0 0.0
      %526 = vmatprep.subr.mxu0 0.0
      %527 = vmatpush1.msra.mxu0 0.0
      %528 = vmatprep.subr.mxu0 0.0
      %529 = vmatpush1.msra.mxu0 0.0
      %530 = vmatprep.subr.mxu0 0.0
      %531 = vmatpush1.msra.mxu0 0.0
      %532 = vmatprep.subr.mxu0 0.0
      %533 = vmatpush1.msra.mxu0 0.0
      %534 = vmatprep.subr.mxu0 0.0
      %535 = vmatpush1.msra.mxu0 0.0
      %536 = vmatprep.subr.mxu0 0.0
      %537 = vmatpush1.msra.mxu0 0.0
      %538 = vmatprep.subr.mxu0 0.0
      %539 = vmatpush1.msra.mxu0 0.0
      %540 = vmatprep.subr.mxu0 0.0
      %541 = vmatpush1.msra.mxu0 0.0
      %542 = vmatprep.subr.mxu0 0.0
      %543 = vmatpush1.msra.mxu0 0.0
      %544 = vmatprep.subr.mxu0 0.0
      %545 = vmatpush1.msra.mxu0 0.0
      %546 = vmatprep.subr.mxu0 0.0
      %547 = vmatpush1.msra.mxu0 0.0
      %548 = vmatprep.subr.mxu0 0.0
      %549 = vmatpush1.msra.mxu0 0.0
      %550 = vmatprep.subr.mxu0 0.0
      %551 = vmatpush1.msra.mxu0 0.0
      %552 = vmatprep.subr.mxu0 0.0
      %553 = vmatpush1.msra.mxu0 0.0
      %554 = vmatprep.subr.mxu0 0.0
      %555 = vmatpush1.msra.mxu0 0.0
      %556 = vmatprep.subr.mxu0 0.0
      %557 = vmatpush1.msra.mxu0 0.0
      %558 = vmatprep.subr.mxu0 0.0
      %559 = vmatpush1.msra.mxu0 0.0
      %560 = vmatprep.subr.mxu0 0.0
      %561 = vmatpush1.msra.mxu0 0.0
      %562 = vmatprep.subr.mxu0 0.0
      %563 = vmatpush1.msra.mxu0 0.0
      %564 = vmatprep.subr.mxu0 0.0
      %565 = vmatpush1.msra.mxu0 0.0
      %566 = vmatprep.subr.mxu0 0.0
      %567 = vmatpush1.msra.mxu0 0.0
      %568 = vmatprep.subr.mxu0 0.0
      %569 = vmatpush1.msra.mxu0 0.0
      %570 = vmatprep.subr.mxu0 0.0
      %571 = vmatpush1.msra.mxu0 0.0
      %572 = vmatprep.subr.mxu0 0.0
      %573 = vmatpush1.msra.mxu0 0.0
      %574 = vmatprep.subr.mxu0 0.0
      %575 = vmatpush1.msra.mxu0 0.0
      %576 = vmatprep.subr.mxu0 0.0
      %577 = vmatpush1.msra.mxu0 0.0
      %578 = vmatprep.subr.mxu0 0.0
      %579 = vmatpush1.msra.mxu0 0.0
      %580 = vmatprep.mubr.f32.mxu0 0.0
      %581 = vmatmul.mubr.f32.gmra.mrb[0].mxu0 %v514
      %v582 = vpop.f32.mrb[0].mxu0
      %v583 = vadd.f32 0.0, %v582
      %v584 = vpop.f32.mrb[0].mxu0
      %585 = vdwg.mxu0
      %v586 = vadd.f32 %v351, %v583
      %v587 = vtanh.pop %v586
      %v589 = vsel %vm362, %v587, 0
      %591 = vmatprep.subr.mxu0 0.0
      %592 = vmatpush1.msra.mxu0 %v359
      %593 = vmatprep.subr.mxu0 0.0
      %594 = vmatpush1.msra.mxu0 %v360
      %595 = vmatprep.subr.mxu0 0.0
      %596 = vmatpush1.msra.mxu0 0.0
      %597 = vmatprep.subr.mxu0 0.0
      %598 = vmatpush1.msra.mxu0 0.0
      %599 = vmatprep.subr.mxu0 0.0
      %600 = vmatpush1.msra.mxu0 0.0
      %601 = vmatprep.subr.mxu0 0.0
      %602 = vmatpush1.msra.mxu0 0.0
      %603 = vmatprep.subr.mxu0 0.0
      %604 = vmatpush1.msra.mxu0 0.0
      %605 = vmatprep.subr.mxu0 0.0
      %606 = vmatpush1.msra.mxu0 0.0
      %607 = vmatprep.subr.mxu0 0.0
      %608 = vmatpush1.msra.mxu0 0.0
      %609 = vmatprep.subr.mxu0 0.0
      %610 = vmatpush1.msra.mxu0 0.0
      %611 = vmatprep.subr.mxu0 0.0
      %612 = vmatpush1.msra.mxu0 0.0
      %613 = vmatprep.subr.mxu0 0.0
      %614 = vmatpush1.msra.mxu0 0.0
      %615 = vmatprep.subr.mxu0 0.0
      %616 = vmatpush1.msra.mxu0 0.0
      %617 = vmatprep.subr.mxu0 0.0
      %618 = vmatpush1.msra.mxu0 0.0
      %619 = vmatprep.subr.mxu0 0.0
      %620 = vmatpush1.msra.mxu0 0.0
      %621 = vmatprep.subr.mxu0 0.0
      %622 = vmatpush1.msra.mxu0 0.0
      %623 = vmatprep.subr.mxu0 0.0
      %624 = vmatpush1.msra.mxu0 0.0
      %625 = vmatprep.subr.mxu0 0.0
      %626 = vmatpush1.msra.mxu0 0.0
      %627 = vmatprep.subr.mxu0 0.0
      %628 = vmatpush1.msra.mxu0 0.0
      %629 = vmatprep.subr.mxu0 0.0
      %630 = vmatpush1.msra.mxu0 0.0
      %631 = vmatprep.subr.mxu0 0.0
      %632 = vmatpush1.msra.mxu0 0.0
      %633 = vmatprep.subr.mxu0 0.0
      %634 = vmatpush1.msra.mxu0 0.0
      %635 = vmatprep.subr.mxu0 0.0
      %636 = vmatpush1.msra.mxu0 0.0
      %637 = vmatprep.subr.mxu0 0.0
      %638 = vmatpush1.msra.mxu0 0.0
      %639 = vmatprep.subr.mxu0 0.0
      %640 = vmatpush1.msra.mxu0 0.0
      %641 = vmatprep.subr.mxu0 0.0
      %642 = vmatpush1.msra.mxu0 0.0
      %643 = vmatprep.subr.mxu0 0.0
      %644 = vmatpush1.msra.mxu0 0.0
      %645 = vmatprep.subr.mxu0 0.0
      %646 = vmatpush1.msra.mxu0 0.0
      %647 = vmatprep.subr.mxu0 0.0
      %648 = vmatpush1.msra.mxu0 0.0
      %649 = vmatprep.subr.mxu0 0.0
      %650 = vmatpush1.msra.mxu0 0.0
      %651 = vmatprep.subr.mxu0 0.0
      %652 = vmatpush1.msra.mxu0 0.0
      %653 = vmatprep.subr.mxu0 0.0
      %654 = vmatpush1.msra.mxu0 0.0
      %655 = vmatprep.mubr.f32.mxu0 0.0
      %656 = vmatmul.mubr.f32.gmra.mrb[0].mxu0 %v589
      %v657 = vpop.f32.mrb[0].mxu0
      %v658 = vadd.f32 0.0, %v657
      %v659 = vpop.f32.mrb[0].mxu0
      %660 = vdwg.mxu0
      %v661 = vadd.f32 %v356, %v658
      %v662 = vtanh.pop %v661
      %663 = vst.msk [vmem:[#allocation2] sm:$0xff] %vm362, %v662
      %p664 = scmp.eq.s32.totalorder %s17, 1
      // Predicated region
      $region49: #{tpu_custom_call.1} parent=43 // pred_check
        %p665 = pneg %p664
      $region50: #{tpu_custom_call.1} parent=43 // pred_check_branch
        %667 = sbr.rel (%p665) target = $region52
      $region51: #{tpu_custom_call.1} parent=43 // pred_region
        %v668 = vld [vmem:[%s4] sm:$0xff]
        %v669 = vld [vmem:[%s4 + $0x8] sm:$0xff]
        %v670 = vld [vmem:[%s5] sm:$0x1]
        %v672 = vlaneseq
        %v673 = vshrl.u32 %v672, 7
        %v674 = vsub.s32 0, %v673
        %v675 = vrot.slane %v670, %v674
        %v678 = vsel %vm362, %v662, 0
        %680 = vmatprep.subr.mxu0 0.0
        %681 = vmatpush1.msra.mxu0 %v668
        %682 = vmatprep.subr.mxu0 0.0
        %683 = vmatpush1.msra.mxu0 %v669
        %684 = vmatprep.subr.mxu0 0.0
        %685 = vmatpush1.msra.mxu0 0.0
        %686 = vmatprep.subr.mxu0 0.0
        %687 = vmatpush1.msra.mxu0 0.0
        %688 = vmatprep.subr.mxu0 0.0
        %689 = vmatpush1.msra.mxu0 0.0
        %690 = vmatprep.subr.mxu0 0.0
        %691 = vmatpush1.msra.mxu0 0.0
        %692 = vmatprep.subr.mxu0 0.0
        %693 = vmatpush1.msra.mxu0 0.0
        %694 = vmatprep.subr.mxu0 0.0
        %695 = vmatpush1.msra.mxu0 0.0
        %696 = vmatprep.subr.mxu0 0.0
        %697 = vmatpush1.msra.mxu0 0.0
        %698 = vmatprep.subr.mxu0 0.0
        %699 = vmatpush1.msra.mxu0 0.0
        %700 = vmatprep.subr.mxu0 0.0
        %701 = vmatpush1.msra.mxu0 0.0
        %702 = vmatprep.subr.mxu0 0.0
        %703 = vmatpush1.msra.mxu0 0.0
        %704 = vmatprep.subr.mxu0 0.0
        %705 = vmatpush1.msra.mxu0 0.0
        %706 = vmatprep.subr.mxu0 0.0
        %707 = vmatpush1.msra.mxu0 0.0
        %708 = vmatprep.subr.mxu0 0.0
        %709 = vmatpush1.msra.mxu0 0.0
        %710 = vmatprep.subr.mxu0 0.0
        %711 = vmatpush1.msra.mxu0 0.0
        %712 = vmatprep.subr.mxu0 0.0
        %713 = vmatpush1.msra.mxu0 0.0
        %714 = vmatprep.subr.mxu0 0.0
        %715 = vmatpush1.msra.mxu0 0.0
        %716 = vmatprep.subr.mxu0 0.0
        %717 = vmatpush1.msra.mxu0 0.0
        %718 = vmatprep.subr.mxu0 0.0
        %719 = vmatpush1.msra.mxu0 0.0
        %720 = vmatprep.subr.mxu0 0.0
        %721 = vmatpush1.msra.mxu0 0.0
        %722 = vmatprep.subr.mxu0 0.0
        %723 = vmatpush1.msra.mxu0 0.0
        %724 = vmatprep.subr.mxu0 0.0
        %725 = vmatpush1.msra.mxu0 0.0
        %726 = vmatprep.subr.mxu0 0.0
        %727 = vmatpush1.msra.mxu0 0.0
        %728 = vmatprep.subr.mxu0 0.0
        %729 = vmatpush1.msra.mxu0 0.0
        %730 = vmatprep.subr.mxu0 0.0
        %731 = vmatpush1.msra.mxu0 0.0
        %732 = vmatprep.subr.mxu0 0.0
        %733 = vmatpush1.msra.mxu0 0.0
        %734 = vmatprep.subr.mxu0 0.0
        %735 = vmatpush1.msra.mxu0 0.0
        %736 = vmatprep.subr.mxu0 0.0
        %737 = vmatpush1.msra.mxu0 0.0
        %738 = vmatprep.subr.mxu0 0.0
        %739 = vmatpush1.msra.mxu0 0.0
        %740 = vmatprep.subr.mxu0 0.0
        %741 = vmatpush1.msra.mxu0 0.0
        %742 = vmatprep.subr.mxu0 0.0
        %743 = vmatpush1.msra.mxu0 0.0
        %744 = vmatprep.mubr.f32.mxu0 0.0
        %745 = vmatmul.mubr.f32.gmra.mrb[0].mxu0 %v678
        %v746 = vpop.f32.mrb[0].mxu0
        %v747 = vadd.f32 %v675, %v746
        %v748 = vpop.f32.mrb[0].mxu0
        %749 = vdwg.mxu0
        %vm750 = vcmask 15360
        %751 = vst.msk [vmem:[%s6] sm:$0xff] %vm750, %v747
      $region52: #{tpu_custom_call.1} parent=43 // pred_fallthru
        _
      // Predicated region
      $region53: #{tpu_custom_call.1} parent=43 // pred_check
        %p752 = pneg %p161
      $region54: #{tpu_custom_call.1} parent=43 // pred_check_branch
        %754 = sbr.rel (%p752) target = $region56
      $region55: #{tpu_custom_call.1} parent=43 // pred_region
        _
      $region56: #{tpu_custom_call.1} parent=43 // pred_fallthru
        _
      // Predicated region
      $region57: #{tpu_custom_call.1} parent=43 // pred_check
        %p755 = pneg %p161
      $region58: #{tpu_custom_call.1} parent=43 // pred_check_branch
        %757 = sbr.rel (%p755) target = $region60
      $region59: #{tpu_custom_call.1} parent=43 // pred_region
        _
      $region60: #{tpu_custom_call.1} parent=43 // pred_fallthru
        _
    $region44: #{tpu_custom_call.1} parent=5 // pred_fallthru
      _
    %p758 = scmp.le.s32.totalorder 2, %s12
    // Predicated region
    $region61: #{tpu_custom_call.1} parent=5 // pred_check
      %p759 = pneg %p758
    $region62: #{tpu_custom_call.1} parent=5 // pred_check_branch
      %761 = sbr.rel (%p759) target = $region64
    $region63: #{tpu_custom_call.1} parent=5 // pred_region
      %s762 = ssub.s32 %s12, 2
    $region64: #{tpu_custom_call.1} parent=5 // pred_fallthru
      _
  $region6: #{tpu_custom_call.1} parent=0 // loop_footer
    %s16 = sadd.s32 1, %s12
  $region7: #{tpu_custom_call.1} parent=0 // loop_footer_branch
    %11 = sbr.rel target = $region3
  $region8: #{tpu_custom_call.1} parent=0 // loop_exit
    _

</llo_original>
